<compile_context>
chip_gen: v7x
topology: tpu7x:2x2x1
jax: 0.10.0
libtpu: 0.0.40
codegen_flags: <defaults>
</compile_context>

<pallas_src>
import jax
import jax.numpy as jnp
from jax import lax
from jax.experimental import pallas as pl
from jax.experimental.pallas import tpu as pltpu


def _self_attention_kernel(h_ref, w1_ref, w2_ref, out_ref):
    # h_ref:   (Bblk, S, D)
    # w1_ref:  (da, D)
    # w2_ref:  (r, da)
    # out_ref: (Bblk, r, S)
    bblk, seq, d = h_ref.shape

    # Flatten batch into the matmul N dim; D stays in lanes for the load.
    x = h_ref[...].reshape(bblk * seq, d)                       # (Bblk*S, D)

    # hidden^T = tanh(W1 @ X^T) -> (da, Bblk*S). Contracting on the last axis
    # of BOTH operands avoids materializing any transposed copy in-kernel.
    hidden_t = jnp.tanh(
        lax.dot_general(
            w1_ref[...], x,
            dimension_numbers=(((1,), (1,)), ((), ())),
            preferred_element_type=jnp.float32,
        )
    )                                                           # (da, Bblk*S) f32

    # scores^T = W2 @ hidden^T -> (r, Bblk*S); tiny matmul, kept in f32.
    scores_t = lax.dot_general(
        w2_ref[...].astype(jnp.float32), hidden_t,
        dimension_numbers=(((1,), (0,)), ((), ())),
        preferred_element_type=jnp.float32,
    )                                                           # (r, Bblk*S)

    # Per-batch softmax over the sequence axis (now the lane axis) and a direct
    # lane-dense (r, S) store -- no output transpose. Static unrolled loop.
    for b in range(bblk):
        s_b = scores_t[:, b * seq:(b + 1) * seq]                # (r, S)
        m = jnp.max(s_b, axis=-1, keepdims=True)
        e = jnp.exp(s_b - m)
        denom = jnp.sum(e, axis=-1, keepdims=True)
        attn = e * pl.reciprocal(denom, approx=True)            # EUP vrcp (free slot)
        out_ref[b] = attn.astype(out_ref.dtype)


def self_attention(h, w1, w2, *, compute_dtype=None, block_b=None):
    """h: (B, S, D); w1: (da, D); w2: (r, da)  ->  (B, r, S)."""
    B, S, D = h.shape
    da, d_chk = w1.shape
    r, da_chk = w2.shape
    assert d_chk == D and da_chk == da

    out_dtype = h.dtype
    if compute_dtype is not None:
        h = h.astype(compute_dtype)
        w1 = w1.astype(compute_dtype)
        w2 = w2.astype(compute_dtype)

    # Pick the largest divisor of B whose (Bblk, S, D) block stays under a
    # conservative per-buffer VMEM budget (the pipeline double-buffers it),
    # so the same block sizing is safe on v7x (64 MiB) and v5e (16 MiB scoped).
    if block_b is None:
        itemsize = jnp.dtype(h.dtype).itemsize
        budget_bytes = 4 * 1024 * 1024
        max_b = max(1, budget_bytes // max(1, S * D * itemsize))
        max_b = int(min(max_b, B, 16))      # also caps softmax-loop unrolling
        block_b = 1
        for cand in range(max_b, 0, -1):
            if B % cand == 0:
                block_b = cand
                break
    assert B % block_b == 0
    # NOTE: for very long sequences where even a (1, S, D) block exceeds the
    # budget, the next step is an extra "arbitrary" S-tile grid axis with the
    # (r, S) scores kept in persistent VMEM scratch and the softmax run under
    # pl.when on the last tile. Not needed at these shapes.

    grid = (B // block_b,)

    return pl.pallas_call(
        _self_attention_kernel,
        out_shape=jax.ShapeDtypeStruct((B, r, S), out_dtype),
        grid_spec=pltpu.PrefetchScalarGridSpec(
            num_scalar_prefetch=0,
            grid=grid,
            in_specs=[
                pl.BlockSpec((block_b, S, D), lambda i: (i, 0, 0)),
                pl.BlockSpec((da, D), lambda i: (0, 0)),
                pl.BlockSpec((r, da), lambda i: (0, 0)),
            ],
            out_specs=pl.BlockSpec((block_b, r, S), lambda i: (i, 0, 0)),
        ),
        compiler_params=pltpu.CompilerParams(
            dimension_semantics=("parallel",),
            vmem_limit_bytes=48 * 1024 * 1024,
        ),
    )(h, w1, w2)


def self_attention_ref(h, w1, w2):
    """Pure-JAX reference matching the PyTorch module."""
    hidden = jnp.tanh(jnp.einsum("bsd,ad->bsa", h, w1))   # (B, S, da)
    scores = jnp.einsum("bsa,ra->bsr", hidden, w2)        # (B, S, r)
    attn = jax.nn.softmax(scores, axis=1)                 # softmax over seq
    return jnp.transpose(attn, (0, 2, 1))                 # (B, r, S)


if __name__ == "__main__":
    # Small shapes consistent with the module: batch=2, seq=8, input_dim=32, da=16, r=4
    B, S, D, DA, R = 2, 8, 32, 16, 4

    key = jax.random.PRNGKey(0)
    k_h, k_w1, k_w2 = jax.random.split(key, 3)

    h = jax.random.normal(k_h, (B, S, D), dtype=jnp.float32)
    # Weight init mimicking nn.Linear's uniform(-1/sqrt(fan_in), 1/sqrt(fan_in))
    w1 = jax.random.uniform(k_w1, (DA, D), dtype=jnp.float32,
                            minval=-1.0 / (D ** 0.5), maxval=1.0 / (D ** 0.5))
    w2 = jax.random.uniform(k_w2, (R, DA), dtype=jnp.float32,
                            minval=-1.0 / (DA ** 0.5), maxval=1.0 / (DA ** 0.5))

    ref = self_attention_ref(h, w1, w2)

    # f32 path (tolerance slightly loosened for the approx EUP reciprocal).
    out = jax.block_until_ready(self_attention(h, w1, w2))
    assert out.shape == (B, R, S)
    assert jnp.allclose(out, ref, atol=2e-3, rtol=2e-3), "f32 kernel mismatch vs reference"

    # bf16 fast path: halves HBM traffic on h (the mem-bound input), f32 accumulation.
    out_bf16 = jax.block_until_ready(
        self_attention(h, w1, w2, compute_dtype=jnp.bfloat16))
    assert out_bf16.shape == (B, R, S)
    assert jnp.allclose(out_bf16, ref, atol=5e-2), "bf16 kernel mismatch vs reference"

    print("KERNEL_OK")
</pallas_src>

<mosaic_0001>
module attributes {stable_mosaic.version = 11 : i64} {
  func.func @_self_attention_kernel(%arg0: i32, %arg1: memref<2x8x32xf32, #tpu.memory_space<vmem>>, %arg2: memref<16x32xf32, #tpu.memory_space<vmem>>, %arg3: memref<4x16xf32, #tpu.memory_space<vmem>>, %arg4: memref<2x4x8xf32, #tpu.memory_space<vmem>>) attributes {dimension_semantics = [#tpu.dimension_semantics<parallel>], iteration_bounds = array<i64: 1>, scalar_prefetch = 0 : i64, scratch_operands = 0 : i64, tpu.core_type = #tpu.core_type<tc>, window_params = [{transform_indices = @transform_0, window_bounds = array<i64: 2, 8, 32>}, {pipeline_mode = #tpu.pipeline_mode<synchronous>, transform_indices = @transform_1, window_bounds = array<i64: 16, 32>}, {pipeline_mode = #tpu.pipeline_mode<synchronous>, transform_indices = @transform_2, window_bounds = array<i64: 4, 16>}, {transform_indices = @transform_3, window_bounds = array<i64: 2, 4, 8>}]} {
    %c0 = arith.constant 0 : index
    %c0_0 = arith.constant 0 : index
    %c0_1 = arith.constant 0 : index
    %0 = vector.load %arg1[%c0, %c0_0, %c0_1] : memref<2x8x32xf32, #tpu.memory_space<vmem>>, vector<2x8x32xf32>
    %1 = vector.shape_cast %0 : vector<2x8x32xf32> to vector<16x32xf32>
    %c0_2 = arith.constant 0 : index
    %c0_3 = arith.constant 0 : index
    %2 = vector.load %arg2[%c0_2, %c0_3] : memref<16x32xf32, #tpu.memory_space<vmem>>, vector<16x32xf32>
    %cst = arith.constant dense<0.000000e+00> : vector<16x16xf32>
    %3 = tpu.matmul %2, %1, %cst {dimension_numbers = #tpu.dot_dimension_numbers<[1], [1], [0], [0], [0, 0, 1, 0], [], []>} : vector<16x32xf32>, vector<16x32xf32>, vector<16x16xf32> -> vector<16x16xf32>
    %4 = math.tanh %3 : vector<16x16xf32>
    %c0_4 = arith.constant 0 : index
    %c0_5 = arith.constant 0 : index
    %5 = vector.load %arg3[%c0_4, %c0_5] : memref<4x16xf32, #tpu.memory_space<vmem>>, vector<4x16xf32>
    %cst_6 = arith.constant dense<0.000000e+00> : vector<4x16xf32>
    %6 = tpu.matmul %5, %4, %cst_6 {dimension_numbers = #tpu.dot_dimension_numbers<[1], [0], [0], [1], [0, 0, 1, 1], [], []>} : vector<4x16xf32>, vector<16x16xf32>, vector<4x16xf32> -> vector<4x16xf32>
    %7 = vector.extract_strided_slice %6 {offsets = [0, 0], sizes = [4, 8], strides = [1, 1]} : vector<4x16xf32> to vector<4x8xf32>
    %cst_7 = arith.constant dense<0xFF800000> : vector<4xf32>
    %8 = vector.multi_reduction <maximumf>, %7, %cst_7 [1] : vector<4x8xf32> to vector<4xf32>
    %9 = vector.shape_cast %8 : vector<4xf32> to vector<4x1xf32>
    %10 = vector.broadcast %9 : vector<4x1xf32> to vector<4x8xf32>
    %11 = arith.subf %7, %10 : vector<4x8xf32>
    %12 = math.exp %11 : vector<4x8xf32>
    %cst_8 = arith.constant dense<0.000000e+00> : vector<4xf32>
    %13 = vector.multi_reduction <add>, %12, %cst_8 [1] : vector<4x8xf32> to vector<4xf32>
    %14 = vector.shape_cast %13 : vector<4xf32> to vector<4x1xf32>
    %15 = tpu.reciprocal %14 {approx = true} : vector<4x1xf32> -> vector<4x1xf32>
    %16 = vector.broadcast %15 : vector<4x1xf32> to vector<4x8xf32>
    %17 = arith.mulf %12, %16 : vector<4x8xf32>
    %c0_9 = arith.constant 0 : index
    %c0_10 = arith.constant 0 : index
    %c0_11 = arith.constant 0 : index
    %18 = vector.load %arg4[%c0_9, %c0_10, %c0_11] : memref<2x4x8xf32, #tpu.memory_space<vmem>>, vector<1x4x8xf32>
    %19 = vector.shape_cast %18 : vector<1x4x8xf32> to vector<4x8xf32>
    %20 = vector.shape_cast %17 : vector<4x8xf32> to vector<1x4x8xf32>
    tpu.vector_store %arg4[%c0_9, %c0_10, %c0_11], %20 {strides = array<i32>} : memref<2x4x8xf32, #tpu.memory_space<vmem>>, vector<1x4x8xf32>,
    %21 = vector.extract_strided_slice %6 {offsets = [0, 8], sizes = [4, 8], strides = [1, 1]} : vector<4x16xf32> to vector<4x8xf32>
    %cst_12 = arith.constant dense<0xFF800000> : vector<4xf32>
    %22 = vector.multi_reduction <maximumf>, %21, %cst_12 [1] : vector<4x8xf32> to vector<4xf32>
    %23 = vector.shape_cast %22 : vector<4xf32> to vector<4x1xf32>
    %24 = vector.broadcast %23 : vector<4x1xf32> to vector<4x8xf32>
    %25 = arith.subf %21, %24 : vector<4x8xf32>
    %26 = math.exp %25 : vector<4x8xf32>
    %cst_13 = arith.constant dense<0.000000e+00> : vector<4xf32>
    %27 = vector.multi_reduction <add>, %26, %cst_13 [1] : vector<4x8xf32> to vector<4xf32>
    %28 = vector.shape_cast %27 : vector<4xf32> to vector<4x1xf32>
    %29 = tpu.reciprocal %28 {approx = true} : vector<4x1xf32> -> vector<4x1xf32>
    %30 = vector.broadcast %29 : vector<4x1xf32> to vector<4x8xf32>
    %31 = arith.mulf %26, %30 : vector<4x8xf32>
    %c1 = arith.constant 1 : index
    %c0_14 = arith.constant 0 : index
    %c0_15 = arith.constant 0 : index
    %32 = vector.load %arg4[%c1, %c0_14, %c0_15] : memref<2x4x8xf32, #tpu.memory_space<vmem>>, vector<1x4x8xf32>
    %33 = vector.shape_cast %32 : vector<1x4x8xf32> to vector<4x8xf32>
    %34 = vector.shape_cast %31 : vector<4x8xf32> to vector<1x4x8xf32>
    tpu.vector_store %arg4[%c1, %c0_14, %c0_15], %34 {strides = array<i32>} : memref<2x4x8xf32, #tpu.memory_space<vmem>>, vector<1x4x8xf32>,
    return
  }
  func.func @transform_0(%arg0: i32) -> (i32, i32, i32) {
    %c0_i32 = arith.constant 0 : i32
    %c0_i32_0 = arith.constant 0 : i32
    %c0_i32_1 = arith.constant 0 : i32
    return %arg0, %c0_i32, %c0_i32_0 : i32, i32, i32
  }
  func.func @transform_1(%arg0: i32) -> (i32, i32) {
    %c0_i32 = arith.constant 0 : i32
    %c0_i32_0 = arith.constant 0 : i32
    %c0_i32_1 = arith.constant 0 : i32
    return %c0_i32, %c0_i32_0 : i32, i32
  }
  func.func @transform_2(%arg0: i32) -> (i32, i32) {
    %c0_i32 = arith.constant 0 : i32
    %c0_i32_0 = arith.constant 0 : i32
    %c0_i32_1 = arith.constant 0 : i32
    return %c0_i32, %c0_i32_0 : i32, i32
  }
  func.func @transform_3(%arg0: i32) -> (i32, i32, i32) {
    %c0_i32 = arith.constant 0 : i32
    %c0_i32_0 = arith.constant 0 : i32
    %c0_i32_1 = arith.constant 0 : i32
    return %arg0, %c0_i32, %c0_i32_0 : i32, i32, i32
  }
}

</mosaic_0001>

<llo_original>
// kernel: tpu_custom_call.1
$region0: #{tpu_custom_call.1}
  #allocation0 [shape = 'u32[]', space=smem, size = 0x4, offset = 0x4, fixed_abs, tag = 'smem constant byte address 0x4 - core index']
  #allocation1 [shape = 'u32[144,128]{1,0:T(1,128)}', space=vmem, size = 0x12000, scoped, tag = 'internal scratch']
  %s0 = inlined_call_operand.hbm [shape: f32[2,8,32], index: 0, kind: input, shape index: {}]
  %s1 = inlined_call_operand.hbm [shape: f32[16,32], index: 1, kind: input, shape index: {}]
  %s2 = inlined_call_operand.vmem [shape: f32[4,16], index: 2, kind: input, shape index: {}]
  %s3 = inlined_call_operand.hbm [shape: f32[2,4,8], index: 3, kind: output, shape index: {}]
  %s4 = sld [smem:[#allocation0]]
  $region30: #{tpu_custom_call.1} parent=0
    _
  %s6 = ssub.s32 1, %s4
  %s7 = scalar_select 0, %s6, %s4
  $region1: #{tpu_custom_call.1} parent=0
    #allocation2 [shape = 'u8[8192]{0}', space=vmem, size = 0x2000, scoped, tag = 'input window, operand 0, single buffered']
    #allocation3 [shape = 's32[1]{0}', space=sflag, size = 0x4, scoped, tag = 'scoped memory for tpu_custom_call.1']
    #allocation4 [shape = 's32[1]{0}', space=sflag, size = 0x4, scoped, tag = 'scoped memory for tpu_custom_call.1']
    #allocation5 [shape = 'u8[8192]{0}', space=vmem, size = 0x2000, scoped, tag = 'input window, operand 1, single buffered']
    #allocation6 [shape = 's32[1]{0}', space=sflag, size = 0x4, scoped, tag = 'scoped memory for tpu_custom_call.1']
    #allocation7 [shape = 'u8[4096]{0}', space=vmem, size = 0x1000, scoped, tag = 'output window, operand 0, single buffered']
    %8 = vsyncpa [#allocation3], 0
    %9 = vsyncpa [#allocation6], 0
    %10 = vsyncpa [#allocation4], 0
    // Predicated region
    $region2: #{tpu_custom_call.1} parent=1 // pred_check
      _
    $region3: #{tpu_custom_call.1} parent=1 // pred_check_branch
      %12 = sbr.rel (0) target = $region5
    $region4: #{tpu_custom_call.1} parent=1 // pred_region
      %s14 = ssub.s32 256, 256
      %15 = vsyncadd [#allocation3], %s14
      %s16 = sshll.u32 [#allocation2], 4
      %s17 = int_to_ptr.vmem [resolvable:$true] %s16
      %22 = dma.hbm_to_vmem [thread:$0]  %s0, 256, %s17, [#allocation3], 128, 128, 8
    $region5: #{tpu_custom_call.1} parent=1 // pred_fallthru
      _
    // Predicated region
    $region6: #{tpu_custom_call.1} parent=1 // pred_check
      _
    $region7: #{tpu_custom_call.1} parent=1 // pred_check_branch
      %24 = sbr.rel (0) target = $region9
    $region8: #{tpu_custom_call.1} parent=1 // pred_region
      %s26 = ssub.s32 256, 256
      %27 = vsyncadd [#allocation6], %s26
      %s28 = sshll.u32 [#allocation5], 4
      %s29 = int_to_ptr.vmem [resolvable:$true] %s28
      %34 = dma.hbm_to_vmem [thread:$0]  %s1, 256, %s29, [#allocation6], 128, 128, 8
    $region9: #{tpu_custom_call.1} parent=1 // pred_fallthru
      _
    // Predicated region
    $region10: #{tpu_custom_call.1} parent=1 // pred_check
      _
    $region11: #{tpu_custom_call.1} parent=1 // pred_check_branch
      %36 = sbr.rel (0) target = $region13
    $region12: #{tpu_custom_call.1} parent=1 // pred_region
      _
    $region13: #{tpu_custom_call.1} parent=1 // pred_fallthru
      _
    // Predicated region
    $region14: #{tpu_custom_call.1} parent=1 // pred_check
      _
    $region15: #{tpu_custom_call.1} parent=1 // pred_check_branch
      %38 = sbr.rel (0) target = $region17
    $region16: #{tpu_custom_call.1} parent=1 // pred_region
      %39 = dma.done [#allocation3], 256
    $region17: #{tpu_custom_call.1} parent=1 // pred_fallthru
      _
    // Predicated region
    $region18: #{tpu_custom_call.1} parent=1 // pred_check
      _
    $region19: #{tpu_custom_call.1} parent=1 // pred_check_branch
      %41 = sbr.rel (0) target = $region21
    $region20: #{tpu_custom_call.1} parent=1 // pred_region
      %42 = dma.done [#allocation6], 256
    $region21: #{tpu_custom_call.1} parent=1 // pred_fallthru
      _
    %v43 = vld [vmem:[#allocation2] sm:$0xff]
    %v44 = vld [vmem:[#allocation2 + $0x8] sm:$0xff]
    %v45 = vld [vmem:[#allocation5] sm:$0xff]
    %v46 = vld [vmem:[#allocation5 + $0x8] sm:$0xff]
    %vm47 = vcmask 261120
    %v49 = vsel %vm47, %v45, 0
    %v52 = vsel %vm47, %v46, 0
    %v55 = vsel %vm47, %v43, 0
    %v58 = vsel %vm47, %v44, 0
    %60 = vmatprep.subr.mxu0 0.0
    %61 = vmatpush1.xpose.msra.mxu0 %v55
    %62 = vmatprep.subr.mxu0 0.0
    %63 = vmatpush1.xpose.msra.mxu0 %v58
    %64 = vmatprep.subr.mxu0 0.0
    %65 = vmatpush1.xpose.msra.mxu0 0.0
    %66 = vmatprep.subr.mxu0 0.0
    %67 = vmatpush1.xpose.msra.mxu0 0.0
    %68 = vmatprep.subr.mxu0 0.0
    %69 = vmatpush1.xpose.msra.mxu0 0.0
    %70 = vmatprep.subr.mxu0 0.0
    %71 = vmatpush1.xpose.msra.mxu0 0.0
    %72 = vmatprep.subr.mxu0 0.0
    %73 = vmatpush1.xpose.msra.mxu0 0.0
    %74 = vmatprep.subr.mxu0 0.0
    %75 = vmatpush1.xpose.msra.mxu0 0.0
    %76 = vmatprep.subr.mxu0 0.0
    %77 = vmatpush1.xpose.msra.mxu0 0.0
    %78 = vmatprep.subr.mxu0 0.0
    %79 = vmatpush1.xpose.msra.mxu0 0.0
    %80 = vmatprep.subr.mxu0 0.0
    %81 = vmatpush1.xpose.msra.mxu0 0.0
    %82 = vmatprep.subr.mxu0 0.0
    %83 = vmatpush1.xpose.msra.mxu0 0.0
    %84 = vmatprep.subr.mxu0 0.0
    %85 = vmatpush1.xpose.msra.mxu0 0.0
    %86 = vmatprep.subr.mxu0 0.0
    %87 = vmatpush1.xpose.msra.mxu0 0.0
    %88 = vmatprep.subr.mxu0 0.0
    %89 = vmatpush1.xpose.msra.mxu0 0.0
    %90 = vmatprep.subr.mxu0 0.0
    %91 = vmatpush1.xpose.msra.mxu0 0.0
    %92 = vmatprep.subr.mxu0 0.0
    %93 = vmatpush1.xpose.msra.mxu0 0.0
    %94 = vmatprep.subr.mxu0 0.0
    %95 = vmatpush1.xpose.msra.mxu0 0.0
    %96 = vmatprep.subr.mxu0 0.0
    %97 = vmatpush1.xpose.msra.mxu0 0.0
    %98 = vmatprep.subr.mxu0 0.0
    %99 = vmatpush1.xpose.msra.mxu0 0.0
    %100 = vmatprep.subr.mxu0 0.0
    %101 = vmatpush1.xpose.msra.mxu0 0.0
    %102 = vmatprep.subr.mxu0 0.0
    %103 = vmatpush1.xpose.msra.mxu0 0.0
    %104 = vmatprep.subr.mxu0 0.0
    %105 = vmatpush1.xpose.msra.mxu0 0.0
    %106 = vmatprep.subr.mxu0 0.0
    %107 = vmatpush1.xpose.msra.mxu0 0.0
    %108 = vmatprep.subr.mxu0 0.0
    %109 = vmatpush1.xpose.msra.mxu0 0.0
    %110 = vmatprep.subr.mxu0 0.0
    %111 = vmatpush1.xpose.msra.mxu0 0.0
    %112 = vmatprep.subr.mxu0 0.0
    %113 = vmatpush1.xpose.msra.mxu0 0.0
    %114 = vmatprep.subr.mxu0 0.0
    %115 = vmatpush1.xpose.msra.mxu0 0.0
    %116 = vmatprep.subr.mxu0 0.0
    %117 = vmatpush1.xpose.msra.mxu0 0.0
    %118 = vmatprep.subr.mxu0 0.0
    %119 = vmatpush1.xpose.msra.mxu0 0.0
    %120 = vmatprep.subr.mxu0 0.0
    %121 = vmatpush1.xpose.msra.mxu0 0.0
    %122 = vmatprep.subr.mxu0 0.0
    %123 = vmatpush1.xpose.msra.mxu0 0.0
    %124 = vmatprep.mubr.f32.mxu0 0.0
    %125 = vmatmul.mubr.f32.gmra.mrb[0].mxu0 %v49
    %v126 = vpop.f32.mrb[0].mxu0
    %v127 = vadd.f32 0.0, %v126
    %v128 = vpop.f32.mrb[0].mxu0
    %129 = vmatprep.mubr.f32.mxu0 0.0
    %130 = vmatmul.mubr.f32.gmra.mrb[0].mxu0 %v52
    %v131 = vpop.f32.mrb[0].mxu0
    %v132 = vadd.f32 0.0, %v131
    %v133 = vpop.f32.mrb[0].mxu0
    %134 = vdwg.mxu0
    %v135 = vtanh.pop %v127
    %v136 = vtanh.pop %v132
    %v137 = vld [vmem:[%s2] sm:$0xf]
    %vm138 = vcmask 130048
    %v140 = vsel %vm138, %v137, 0
    %142 = vmatprep.subr.mxu0 0.0
    %143 = vmatpush1.msra.mxu0 %v135
    %144 = vmatprep.subr.mxu0 0.0
    %145 = vmatpush1.msra.mxu0 %v136
    %146 = vmatprep.subr.mxu0 0.0
    %147 = vmatpush1.msra.mxu0 0.0
    %148 = vmatprep.subr.mxu0 0.0
    %149 = vmatpush1.msra.mxu0 0.0
    %150 = vmatprep.subr.mxu0 0.0
    %151 = vmatpush1.msra.mxu0 0.0
    %152 = vmatprep.subr.mxu0 0.0
    %153 = vmatpush1.msra.mxu0 0.0
    %154 = vmatprep.subr.mxu0 0.0
    %155 = vmatpush1.msra.mxu0 0.0
    %156 = vmatprep.subr.mxu0 0.0
    %157 = vmatpush1.msra.mxu0 0.0
    %158 = vmatprep.subr.mxu0 0.0
    %159 = vmatpush1.msra.mxu0 0.0
    %160 = vmatprep.subr.mxu0 0.0
    %161 = vmatpush1.msra.mxu0 0.0
    %162 = vmatprep.subr.mxu0 0.0
    %163 = vmatpush1.msra.mxu0 0.0
    %164 = vmatprep.subr.mxu0 0.0
    %165 = vmatpush1.msra.mxu0 0.0
    %166 = vmatprep.subr.mxu0 0.0
    %167 = vmatpush1.msra.mxu0 0.0
    %168 = vmatprep.subr.mxu0 0.0
    %169 = vmatpush1.msra.mxu0 0.0
    %170 = vmatprep.subr.mxu0 0.0
    %171 = vmatpush1.msra.mxu0 0.0
    %172 = vmatprep.subr.mxu0 0.0
    %173 = vmatpush1.msra.mxu0 0.0
    %174 = vmatprep.subr.mxu0 0.0
    %175 = vmatpush1.msra.mxu0 0.0
    %176 = vmatprep.subr.mxu0 0.0
    %177 = vmatpush1.msra.mxu0 0.0
    %178 = vmatprep.subr.mxu0 0.0
    %179 = vmatpush1.msra.mxu0 0.0
    %180 = vmatprep.subr.mxu0 0.0
    %181 = vmatpush1.msra.mxu0 0.0
    %182 = vmatprep.subr.mxu0 0.0
    %183 = vmatpush1.msra.mxu0 0.0
    %184 = vmatprep.subr.mxu0 0.0
    %185 = vmatpush1.msra.mxu0 0.0
    %186 = vmatprep.subr.mxu0 0.0
    %187 = vmatpush1.msra.mxu0 0.0
    %188 = vmatprep.subr.mxu0 0.0
    %189 = vmatpush1.msra.mxu0 0.0
    %190 = vmatprep.subr.mxu0 0.0
    %191 = vmatpush1.msra.mxu0 0.0
    %192 = vmatprep.subr.mxu0 0.0
    %193 = vmatpush1.msra.mxu0 0.0
    %194 = vmatprep.subr.mxu0 0.0
    %195 = vmatpush1.msra.mxu0 0.0
    %196 = vmatprep.subr.mxu0 0.0
    %197 = vmatpush1.msra.mxu0 0.0
    %198 = vmatprep.subr.mxu0 0.0
    %199 = vmatpush1.msra.mxu0 0.0
    %200 = vmatprep.subr.mxu0 0.0
    %201 = vmatpush1.msra.mxu0 0.0
    %202 = vmatprep.subr.mxu0 0.0
    %203 = vmatpush1.msra.mxu0 0.0
    %204 = vmatprep.subr.mxu0 0.0
    %205 = vmatpush1.msra.mxu0 0.0
    %206 = vmatprep.mubr.f32.mxu0 0.0
    %207 = vmatmul.mubr.f32.gmra.mrb[0].mxu0 %v140
    %v208 = vpop.f32.mrb[0].mxu0
    %v209 = vadd.f32 0.0, %v208
    %v210 = vpop.f32.mrb[0].mxu0
    %211 = vdwg.mxu0
    %vm212 = vcmask 60416
    %v213 = vsel %vm212, %v209, -inf
    %214 = vmax.xlane.f32.xlu0 %v213
    %v215 = vpop.xlane.xlu0 %214
    %v216 = vsub.f32 %v209, %v215
    %v217 = vmul.f32 %v216, 1.442695
    %v218 = vpow.pop %v217
    %v219 = vsel %vm212, %v218, 0.0
    %220 = vadd.xlane.f32.xlu0 %v219
    %v221 = vpop.xlane.xlu0 %220
    %v222 = vrcp.pop %v221
    %v223 = vmul.f32 %v218, %v222
    %224 = vst.msk [vmem:[#allocation7] sm:$0xf] %vm212, %v223
    %vm225 = vcmask 126016
    %v226 = vsel %vm225, %v209, -inf
    %227 = vmax.xlane.f32.xlu0 %v226
    %v228 = vpop.xlane.xlu0 %227
    %v229 = vsub.f32 %v209, %v228
    %v230 = vmul.f32 %v229, 1.442695
    %v231 = vpow.pop %v230
    %233 = vrot.lane.b32.xlu0 %v231, 120
    %v234 = vpop.permute.xlu0 %233
    %v236 = vsel %vm212, %v234, 0.0
    %237 = vadd.xlane.f32.xlu0 %v236
    %v238 = vpop.xlane.xlu0 %237
    %v239 = vrcp.pop %v238
    %v240 = vmul.f32 %v231, %v239
    %242 = vrot.lane.b32.xlu0 %v240, 120
    %v243 = vpop.permute.xlu0 %242
    %s245 = scalar_lea.vmem [#allocation7], 4
    %246 = vst.msk [vmem:[%s245] sm:$0xf] %vm212, %v243
    // Predicated region
    $region22: #{tpu_custom_call.1} parent=1 // pred_check
      _
    $region23: #{tpu_custom_call.1} parent=1 // pred_check_branch
      %248 = sbr.rel (0) target = $region25
    $region24: #{tpu_custom_call.1} parent=1 // pred_region
      %s250 = ssub.s32 128, 128
      %251 = vsyncadd [#allocation4], %s250
      %s252 = sshll.u32 [#allocation7], 4
      %s253 = int_to_ptr.vmem [resolvable:$true] %s252
      %258 = dma.vmem_to_hbm [thread:$0]  %s253, 128, %s3, [#allocation4], 64, 64, 4
    $region25: #{tpu_custom_call.1} parent=1 // pred_fallthru
      _
    // Predicated region
    $region26: #{tpu_custom_call.1} parent=1 // pred_check
      _
    $region27: #{tpu_custom_call.1} parent=1 // pred_check_branch
      %260 = sbr.rel (0) target = $region29
    $region28: #{tpu_custom_call.1} parent=1 // pred_region
      %261 = dma.done [#allocation4], 128
    $region29: #{tpu_custom_call.1} parent=1 // pred_fallthru
      _
    %262 = vsyncpa [#allocation3], 1
    %263 = vsyncpa [#allocation6], 1
    %264 = vsyncpa [#allocation4], 1

</llo_original>
